<compile_context>
chip_gen: v7x
topology: tpu7x:2x2x1
jax: 0.10.0
libtpu: 0.0.40
codegen_flags: <defaults>
</compile_context>

<pallas_src>
import jax
import jax.numpy as jnp
from jax.experimental import pallas as pl
from jax.experimental.pallas import tpu as pltpu

KH = KW = 3           # conv kernel, padding=1, stride=1
H = W = 28            # spatial size implied by the module's forward
CIN, COUT = 3, 8
WP = 32               # padded row width  -> H*WP = 896 = 7*128 (lane dense)
HWP = H * WP          # 896
LPAD = 32 * 32        # flattened padded-image length (1024 = 8*128 lanes)
K = CIN * KH * KW     # 27
KB = K + 1            # +1 "ones" row folds the bias into the matmul


def _conv_kernel(w_ref, xf_ref, o_ref):
    # xf_ref: (CIN, LPAD) zero-padded image flattened with row stride WP.
    # In-kernel im2col: tap (kh, kw) for flat output position p is
    # xf[:, p + kh*WP + kw]  ->  a static lane-shifted slice of width HWP.
    xf = xf_ref[...]
    rows = []
    for kh in range(KH):
        for kw in range(KW):
            off = kh * WP + kw
            rows.append(xf[:, off:off + HWP])              # (CIN, HWP)
    rows.append(jnp.ones((1, HWP), dtype=xf.dtype))        # bias row
    patches = jnp.concatenate(rows, axis=0)                # (KB, HWP) in VMEM
    # One MXU contraction: (COUT, KB) @ (KB, HWP) -> lane-dense (COUT, 896).
    o_ref[...] = jnp.dot(w_ref[...], patches,
                         preferred_element_type=jnp.float32).astype(o_ref.dtype)


@jax.jit
def conv2d_pallas(x_nchw, weight_oihw, bias_1c11):
    """F.conv2d(x, weight, bias, padding=1) for 3x3 kernel, stride=1, N=1."""
    N, Cin, Hx, Wx = x_nchw.shape
    Cout = weight_oihw.shape[0]
    assert (N, Cin, Hx, Wx) == (1, CIN, H, W)
    assert Cout == COUT

    # ---- layout plumbing (fused into the same jitted executable) ----
    # Conv zero-padding (1 on each side) + alignment zeros so every padded row
    # is WP=32 wide and the flat image is exactly 32*32 = 1024 lanes.
    x_pad = jnp.pad(x_nchw[0], ((0, 0), (1, 3), (1, 3)))        # (CIN, 32, 32)
    x_flat = x_pad.reshape(CIN, LPAD)                           # (CIN, 1024)

    # Weight in (kh, kw, cin) k-order to match the in-kernel tap order, with
    # the bias appended as the (K+1)'th column.
    w_mat = weight_oihw.transpose(0, 2, 3, 1).reshape(Cout, K)              # (COUT, 27)
    w_mat = jnp.concatenate([w_mat, bias_1c11.reshape(Cout, 1)], axis=1)    # (COUT, 28)

    out = pl.pallas_call(
        _conv_kernel,
        out_shape=jax.ShapeDtypeStruct((Cout, HWP), x_nchw.dtype),
        # No grid: one invocation, whole-array VMEM blocks.
        in_specs=[
            pl.BlockSpec(memory_space=pltpu.MemorySpace.VMEM),   # (COUT, 28)
            pl.BlockSpec(memory_space=pltpu.MemorySpace.VMEM),   # (CIN, 1024)
        ],
        out_specs=pl.BlockSpec(memory_space=pltpu.MemorySpace.VMEM),
    )(w_mat, x_flat)

    # (COUT, H*WP) -> drop alignment columns -> NCHW
    return out.reshape(Cout, H, WP)[:, :, :W][None]
    # TODO(synk): for batch > 1, add a "parallel" grid axis over N so the
    # second TensorCore on v7x is used; with N=1 there is nothing to shard.


if __name__ == "__main__":
    key = jax.random.PRNGKey(0)
    kx, kw, kb = jax.random.split(key, 3)

    # Shapes implied by the module's forward pass
    x = jax.random.normal(kx, (1, 3, 28, 28), dtype=jnp.float32)
    weight = jax.random.normal(kw, (8, 3, 3, 3), dtype=jnp.float32)
    bias = jax.random.normal(kb, (1, 8, 1, 1), dtype=jnp.float32)

    out = jax.block_until_ready(conv2d_pallas(x, weight, bias))
    assert out.shape == (1, 8, 28, 28), out.shape

    # Reference: semantics of F.conv2d(x, weight, bias, padding=1)
    ref = jax.lax.conv_general_dilated(
        x, weight, window_strides=(1, 1), padding=((1, 1), (1, 1)),
        dimension_numbers=("NCHW", "OIHW", "NCHW"),
    ) + bias
    ref = jax.block_until_ready(ref)
    assert jnp.allclose(out, ref, atol=1e-4, rtol=1e-4), float(jnp.max(jnp.abs(out - ref)))

    print("KERNEL_OK")
</pallas_src>

<mosaic_0001>
module attributes {stable_mosaic.version = 11 : i64} {
  func.func @_conv_kernel(%arg0: memref<8x28xf32, #tpu.memory_space<vmem>>, %arg1: memref<3x1024xf32, #tpu.memory_space<vmem>>, %arg2: memref<8x896xf32, #tpu.memory_space<vmem>>) attributes {dimension_semantics = [], scalar_prefetch = 0 : i64, scratch_operands = 0 : i64, tpu.core_type = #tpu.core_type<tc>} {
    %c0 = arith.constant 0 : index
    %c0_0 = arith.constant 0 : index
    %0 = vector.load %arg1[%c0, %c0_0] : memref<3x1024xf32, #tpu.memory_space<vmem>>, vector<3x1024xf32>
    %1 = vector.extract_strided_slice %0 {offsets = [0, 0], sizes = [3, 896], strides = [1, 1]} : vector<3x1024xf32> to vector<3x896xf32>
    %2 = vector.extract_strided_slice %0 {offsets = [0, 1], sizes = [3, 896], strides = [1, 1]} : vector<3x1024xf32> to vector<3x896xf32>
    %3 = vector.extract_strided_slice %0 {offsets = [0, 2], sizes = [3, 896], strides = [1, 1]} : vector<3x1024xf32> to vector<3x896xf32>
    %4 = vector.extract_strided_slice %0 {offsets = [0, 32], sizes = [3, 896], strides = [1, 1]} : vector<3x1024xf32> to vector<3x896xf32>
    %5 = vector.extract_strided_slice %0 {offsets = [0, 33], sizes = [3, 896], strides = [1, 1]} : vector<3x1024xf32> to vector<3x896xf32>
    %6 = vector.extract_strided_slice %0 {offsets = [0, 34], sizes = [3, 896], strides = [1, 1]} : vector<3x1024xf32> to vector<3x896xf32>
    %7 = vector.extract_strided_slice %0 {offsets = [0, 64], sizes = [3, 896], strides = [1, 1]} : vector<3x1024xf32> to vector<3x896xf32>
    %8 = vector.extract_strided_slice %0 {offsets = [0, 65], sizes = [3, 896], strides = [1, 1]} : vector<3x1024xf32> to vector<3x896xf32>
    %9 = vector.extract_strided_slice %0 {offsets = [0, 66], sizes = [3, 896], strides = [1, 1]} : vector<3x1024xf32> to vector<3x896xf32>
    %cst = arith.constant 1.000000e+00 : f32
    %10 = vector.broadcast %cst : f32 to vector<1x896xf32>
    %11 = tpu.concatenate %1, %2, %3, %4, %5, %6, %7, %8, %9, %10 in 0 : vector<3x896xf32>, vector<3x896xf32>, vector<3x896xf32>, vector<3x896xf32>, vector<3x896xf32>, vector<3x896xf32>, vector<3x896xf32>, vector<3x896xf32>, vector<3x896xf32>, vector<1x896xf32> -> vector<28x896xf32>
    %c0_1 = arith.constant 0 : index
    %c0_2 = arith.constant 0 : index
    %12 = vector.load %arg0[%c0_1, %c0_2] : memref<8x28xf32, #tpu.memory_space<vmem>>, vector<8x28xf32>
    %cst_3 = arith.constant dense<0.000000e+00> : vector<8x896xf32>
    %13 = tpu.matmul %12, %11, %cst_3 {dimension_numbers = #tpu.dot_dimension_numbers<[1], [0], [0], [1], [0, 0, 1, 1], [], []>} : vector<8x28xf32>, vector<28x896xf32>, vector<8x896xf32> -> vector<8x896xf32>
    %c0_4 = arith.constant 0 : index
    %c0_5 = arith.constant 0 : index
    %14 = vector.load %arg2[%c0_4, %c0_5] : memref<8x896xf32, #tpu.memory_space<vmem>>, vector<8x896xf32>
    tpu.vector_store %arg2[%c0_4, %c0_5], %13 {strides = array<i32>} : memref<8x896xf32, #tpu.memory_space<vmem>>, vector<8x896xf32>,
    return
  }
}

</mosaic_0001>

<llo_original>
// kernel: conv2d_pallas.1
$region0: #{conv2d_pallas.1}
  #allocation0 [shape = 'u32[]', space=smem, size = 0x4, offset = 0x4, fixed_abs, tag = 'smem constant byte address 0x4 - core index']
  #allocation1 [shape = 'u32[144,128]{1,0:T(1,128)}', space=vmem, size = 0x12000, scoped, tag = 'internal scratch']
  %s0 = inlined_call_operand.vmem [shape: f32[8,28], index: 0, kind: input, shape index: {}]
  %s1 = inlined_call_operand.vmem [shape: f32[3,1024], index: 1, kind: input, shape index: {}]
  %s2 = inlined_call_operand.vmem [shape: f32[8,896], index: 2, kind: output, shape index: {}]
  %s3 = sld [smem:[#allocation0]]
  $region18: #{conv2d_pallas.1} parent=0
    _
  %s5 = ssub.s32 1, %s3
  %s6 = scalar_select 0, %s5, %s3
  // Predicated region
  $region2: #{conv2d_pallas.1} parent=0 // pred_check
    _
  $region3: #{conv2d_pallas.1} parent=0 // pred_check_branch
    %8 = sbr.rel (0) target = $region5
  $region4: #{conv2d_pallas.1} parent=0 // pred_region
    _
  $region5: #{conv2d_pallas.1} parent=0 // pred_fallthru
    _
  // Predicated region
  $region6: #{conv2d_pallas.1} parent=0 // pred_check
    _
  $region7: #{conv2d_pallas.1} parent=0 // pred_check_branch
    %10 = sbr.rel (0) target = $region9
  $region8: #{conv2d_pallas.1} parent=0 // pred_region
    _
  $region9: #{conv2d_pallas.1} parent=0 // pred_fallthru
    _
  %v11 = vld [vmem:[%s1] sm:$0x77]
  %v12 = vld [vmem:[%s1 + $0x8] sm:$0x77]
  %v13 = vld [vmem:[%s1 + $0x10] sm:$0x77]
  %v14 = vld [vmem:[%s1 + $0x18] sm:$0x77]
  %v19 = vcombine.high %v11, %v11
  %v20 = vcombine.high %v12, %v12
  %v21 = vcombine.high %v13, %v13
  %v25 = vcombine.high %v14, %v14
  %v26 = vrot.slane %v11, 5
  %v27 = vrot.slane %v19, 5
  %v28 = vrot.slane %v12, 5
  %v29 = vrot.slane %v20, 5
  %v30 = vrot.slane %v13, 5
  %v31 = vrot.slane %v21, 5
  %v32 = vrot.slane %v14, 5
  %v33 = vrot.slane %v25, 5
  %34 = vrot.lane.b32.xlu0 %v26, 127
  %v35 = vpop.permute.xlu0 %34
  %36 = vrot.lane.b32.xlu0 %v27, 127
  %v37 = vpop.permute.xlu0 %36
  %38 = vrot.lane.b32.xlu0 %v28, 127
  %v39 = vpop.permute.xlu0 %38
  %40 = vrot.lane.b32.xlu0 %v29, 127
  %v41 = vpop.permute.xlu0 %40
  %42 = vrot.lane.b32.xlu0 %v30, 127
  %v43 = vpop.permute.xlu0 %42
  %44 = vrot.lane.b32.xlu0 %v31, 127
  %v45 = vpop.permute.xlu0 %44
  %46 = vrot.lane.b32.xlu0 %v32, 127
  %v47 = vpop.permute.xlu0 %46
  %48 = vrot.lane.b32.xlu0 %v33, 127
  %v49 = vpop.permute.xlu0 %48
  %vm50 = vcmask 1039360
  %v51 = vsel %vm50, %v35, %v37
  %v52 = vsel %vm50, %v37, %v39
  %v53 = vsel %vm50, %v39, %v41
  %v54 = vsel %vm50, %v41, %v43
  %v55 = vsel %vm50, %v43, %v45
  %v56 = vsel %vm50, %v45, %v47
  %v57 = vsel %vm50, %v47, %v49
  %v65 = vrot.slane %v11, 2
  %v66 = vrot.slane %v19, 2
  %v67 = vrot.slane %v12, 2
  %v68 = vrot.slane %v20, 2
  %v69 = vrot.slane %v13, 2
  %v70 = vrot.slane %v21, 2
  %v71 = vrot.slane %v14, 2
  %v72 = vrot.slane %v25, 2
  %73 = vrot.lane.b32.xlu0 %v65, 126
  %v74 = vpop.permute.xlu0 %73
  %75 = vrot.lane.b32.xlu0 %v66, 126
  %v76 = vpop.permute.xlu0 %75
  %77 = vrot.lane.b32.xlu0 %v67, 126
  %v78 = vpop.permute.xlu0 %77
  %79 = vrot.lane.b32.xlu0 %v68, 126
  %v80 = vpop.permute.xlu0 %79
  %81 = vrot.lane.b32.xlu0 %v69, 126
  %v82 = vpop.permute.xlu0 %81
  %83 = vrot.lane.b32.xlu0 %v70, 126
  %v84 = vpop.permute.xlu0 %83
  %85 = vrot.lane.b32.xlu0 %v71, 126
  %v86 = vpop.permute.xlu0 %85
  %87 = vrot.lane.b32.xlu0 %v72, 126
  %v88 = vpop.permute.xlu0 %87
  %vm89 = vcmask 1031168
  %v90 = vsel %vm89, %v74, %v76
  %v91 = vsel %vm89, %v76, %v78
  %v92 = vsel %vm89, %v78, %v80
  %v93 = vsel %vm89, %v80, %v82
  %v94 = vsel %vm89, %v82, %v84
  %v95 = vsel %vm89, %v84, %v86
  %v96 = vsel %vm89, %v86, %v88
  %v104 = vrot.slane %v11, 7
  %v105 = vrot.slane %v19, 7
  %v106 = vrot.slane %v12, 7
  %v107 = vrot.slane %v20, 7
  %v108 = vrot.slane %v13, 7
  %v109 = vrot.slane %v21, 7
  %v110 = vrot.slane %v14, 7
  %v111 = vrot.slane %v25, 7
  %112 = vrot.lane.b32.xlu0 %v104, 96
  %v113 = vpop.permute.xlu0 %112
  %114 = vrot.lane.b32.xlu0 %v105, 96
  %v115 = vpop.permute.xlu0 %114
  %116 = vrot.lane.b32.xlu0 %v106, 96
  %v117 = vpop.permute.xlu0 %116
  %118 = vrot.lane.b32.xlu0 %v107, 96
  %v119 = vpop.permute.xlu0 %118
  %120 = vrot.lane.b32.xlu0 %v108, 96
  %v121 = vpop.permute.xlu0 %120
  %122 = vrot.lane.b32.xlu0 %v109, 96
  %v123 = vpop.permute.xlu0 %122
  %124 = vrot.lane.b32.xlu0 %v110, 96
  %v125 = vpop.permute.xlu0 %124
  %126 = vrot.lane.b32.xlu0 %v111, 96
  %v127 = vpop.permute.xlu0 %126
  %vm128 = vcmask 785408
  %v129 = vsel %vm128, %v113, %v115
  %v130 = vsel %vm128, %v115, %v117
  %v131 = vsel %vm128, %v117, %v119
  %v132 = vsel %vm128, %v119, %v121
  %v133 = vsel %vm128, %v121, %v123
  %v134 = vsel %vm128, %v123, %v125
  %v135 = vsel %vm128, %v125, %v127
  %v143 = vcombine.low %v11, %v11
  %v144 = vcombine.low %v12, %v12
  %v145 = vcombine.low %v13, %v13
  %v146 = vcombine.low %v14, %v14
  %147 = vrot.lane.b32.xlu0 %v143, 95
  %v148 = vpop.permute.xlu0 %147
  %149 = vrot.lane.b32.xlu0 %v11, 95
  %v150 = vpop.permute.xlu0 %149
  %151 = vrot.lane.b32.xlu0 %v144, 95
  %v152 = vpop.permute.xlu0 %151
  %153 = vrot.lane.b32.xlu0 %v12, 95
  %v154 = vpop.permute.xlu0 %153
  %155 = vrot.lane.b32.xlu0 %v145, 95
  %v156 = vpop.permute.xlu0 %155
  %157 = vrot.lane.b32.xlu0 %v13, 95
  %v158 = vpop.permute.xlu0 %157
  %159 = vrot.lane.b32.xlu0 %v146, 95
  %v160 = vpop.permute.xlu0 %159
  %161 = vrot.lane.b32.xlu0 %v14, 95
  %v162 = vpop.permute.xlu0 %161
  %vm163 = vcmask 777216
  %v164 = vsel %vm163, %v148, %v150
  %v165 = vsel %vm163, %v150, %v152
  %v166 = vsel %vm163, %v152, %v154
  %v167 = vsel %vm163, %v154, %v156
  %v168 = vsel %vm163, %v156, %v158
  %v169 = vsel %vm163, %v158, %v160
  %v170 = vsel %vm163, %v160, %v162
  %v178 = vrot.slane %v11, 1
  %v179 = vrot.slane %v19, 1
  %v180 = vrot.slane %v12, 1
  %v181 = vrot.slane %v20, 1
  %v182 = vrot.slane %v13, 1
  %v183 = vrot.slane %v21, 1
  %v184 = vrot.slane %v14, 1
  %v185 = vrot.slane %v25, 1
  %186 = vrot.lane.b32.xlu0 %v178, 94
  %v187 = vpop.permute.xlu0 %186
  %188 = vrot.lane.b32.xlu0 %v179, 94
  %v189 = vpop.permute.xlu0 %188
  %190 = vrot.lane.b32.xlu0 %v180, 94
  %v191 = vpop.permute.xlu0 %190
  %192 = vrot.lane.b32.xlu0 %v181, 94
  %v193 = vpop.permute.xlu0 %192
  %194 = vrot.lane.b32.xlu0 %v182, 94
  %v195 = vpop.permute.xlu0 %194
  %196 = vrot.lane.b32.xlu0 %v183, 94
  %v197 = vpop.permute.xlu0 %196
  %198 = vrot.lane.b32.xlu0 %v184, 94
  %v199 = vpop.permute.xlu0 %198
  %200 = vrot.lane.b32.xlu0 %v185, 94
  %v201 = vpop.permute.xlu0 %200
  %vm202 = vcmask 769024
  %v203 = vsel %vm202, %v187, %v189
  %v204 = vsel %vm202, %v189, %v191
  %v205 = vsel %vm202, %v191, %v193
  %v206 = vsel %vm202, %v193, %v195
  %v207 = vsel %vm202, %v195, %v197
  %v208 = vsel %vm202, %v197, %v199
  %v209 = vsel %vm202, %v199, %v201
  %v217 = vrot.slane %v11, 6
  %v218 = vrot.slane %v19, 6
  %v219 = vrot.slane %v12, 6
  %v220 = vrot.slane %v20, 6
  %v221 = vrot.slane %v13, 6
  %v222 = vrot.slane %v21, 6
  %v223 = vrot.slane %v14, 6
  %v224 = vrot.slane %v25, 6
  %225 = vrot.lane.b32.xlu0 %v217, 64
  %v226 = vpop.permute.xlu0 %225
  %227 = vrot.lane.b32.xlu0 %v218, 64
  %v228 = vpop.permute.xlu0 %227
  %229 = vrot.lane.b32.xlu0 %v219, 64
  %v230 = vpop.permute.xlu0 %229
  %231 = vrot.lane.b32.xlu0 %v220, 64
  %v232 = vpop.permute.xlu0 %231
  %233 = vrot.lane.b32.xlu0 %v221, 64
  %v234 = vpop.permute.xlu0 %233
  %235 = vrot.lane.b32.xlu0 %v222, 64
  %v236 = vpop.permute.xlu0 %235
  %237 = vrot.lane.b32.xlu0 %v223, 64
  %v238 = vpop.permute.xlu0 %237
  %239 = vrot.lane.b32.xlu0 %v224, 64
  %v240 = vpop.permute.xlu0 %239
  %vm241 = vcmask 523264
  %v242 = vsel %vm241, %v226, %v228
  %v243 = vsel %vm241, %v228, %v230
  %v244 = vsel %vm241, %v230, %v232
  %v245 = vsel %vm241, %v232, %v234
  %v246 = vsel %vm241, %v234, %v236
  %v247 = vsel %vm241, %v236, %v238
  %v248 = vsel %vm241, %v238, %v240
  %v256 = vrot.slane %v11, 3
  %v257 = vrot.slane %v19, 3
  %v258 = vrot.slane %v12, 3
  %v259 = vrot.slane %v20, 3
  %v260 = vrot.slane %v13, 3
  %v261 = vrot.slane %v21, 3
  %v262 = vrot.slane %v14, 3
  %v263 = vrot.slane %v25, 3
  %264 = vrot.lane.b32.xlu0 %v256, 63
  %v265 = vpop.permute.xlu0 %264
  %266 = vrot.lane.b32.xlu0 %v257, 63
  %v267 = vpop.permute.xlu0 %266
  %268 = vrot.lane.b32.xlu0 %v258, 63
  %v269 = vpop.permute.xlu0 %268
  %270 = vrot.lane.b32.xlu0 %v259, 63
  %v271 = vpop.permute.xlu0 %270
  %272 = vrot.lane.b32.xlu0 %v260, 63
  %v273 = vpop.permute.xlu0 %272
  %274 = vrot.lane.b32.xlu0 %v261, 63
  %v275 = vpop.permute.xlu0 %274
  %276 = vrot.lane.b32.xlu0 %v262, 63
  %v277 = vpop.permute.xlu0 %276
  %278 = vrot.lane.b32.xlu0 %v263, 63
  %v279 = vpop.permute.xlu0 %278
  %vm280 = vcmask 515072
  %v281 = vsel %vm280, %v265, %v267
  %v282 = vsel %vm280, %v267, %v269
  %v283 = vsel %vm280, %v269, %v271
  %v284 = vsel %vm280, %v271, %v273
  %v285 = vsel %vm280, %v273, %v275
  %v286 = vsel %vm280, %v275, %v277
  %v287 = vsel %vm280, %v277, %v279
  %295 = vrot.lane.b32.xlu0 %v11, 62
  %v296 = vpop.permute.xlu0 %295
  %297 = vrot.lane.b32.xlu0 %v19, 62
  %v298 = vpop.permute.xlu0 %297
  %299 = vrot.lane.b32.xlu0 %v12, 62
  %v300 = vpop.permute.xlu0 %299
  %301 = vrot.lane.b32.xlu0 %v20, 62
  %v302 = vpop.permute.xlu0 %301
  %303 = vrot.lane.b32.xlu0 %v13, 62
  %v304 = vpop.permute.xlu0 %303
  %305 = vrot.lane.b32.xlu0 %v21, 62
  %v306 = vpop.permute.xlu0 %305
  %307 = vrot.lane.b32.xlu0 %v14, 62
  %v308 = vpop.permute.xlu0 %307
  %309 = vrot.lane.b32.xlu0 %v25, 62
  %v310 = vpop.permute.xlu0 %309
  %vm311 = vcmask 506880
  %v312 = vsel %vm311, %v296, %v298
  %v313 = vsel %vm311, %v298, %v300
  %v314 = vsel %vm311, %v300, %v302
  %v315 = vsel %vm311, %v302, %v304
  %v316 = vsel %vm311, %v304, %v306
  %v317 = vsel %vm311, %v306, %v308
  %v318 = vsel %vm311, %v308, %v310
  %vm326 = vcmask 1042432
  %v327 = vsel %vm326, %v11, %v51
  %v328 = vsel %vm326, %v19, %v52
  %v329 = vsel %vm326, %v12, %v53
  %v330 = vsel %vm326, %v20, %v54
  %v331 = vsel %vm326, %v13, %v55
  %v332 = vsel %vm326, %v21, %v56
  %v333 = vsel %vm326, %v14, %v57
  %vm334 = vcmask 1045504
  %v335 = vsel %vm334, %v327, %v90
  %v336 = vsel %vm334, %v328, %v91
  %v337 = vsel %vm334, %v329, %v92
  %v338 = vsel %vm334, %v330, %v93
  %v339 = vsel %vm334, %v331, %v94
  %v340 = vsel %vm334, %v332, %v95
  %v341 = vsel %vm334, %v333, %v96
  %vm342 = vcmask 1040384
  %v343 = vsel %vm342, %v90, %v129
  %v344 = vsel %vm342, %v91, %v130
  %v345 = vsel %vm342, %v92, %v131
  %v346 = vsel %vm342, %v93, %v132
  %v347 = vsel %vm342, %v94, %v133
  %v348 = vsel %vm342, %v95, %v134
  %v349 = vsel %vm342, %v96, %v135
  %vm350 = vcmask 1043456
  %v351 = vsel %vm350, %v343, %v164
  %v352 = vsel %vm350, %v344, %v165
  %v353 = vsel %vm350, %v345, %v166
  %v354 = vsel %vm350, %v346, %v167
  %v355 = vsel %vm350, %v347, %v168
  %v356 = vsel %vm350, %v348, %v169
  %v357 = vsel %vm350, %v349, %v170
  %vm358 = vcmask 1046528
  %v359 = vsel %vm358, %v351, %v203
  %v360 = vsel %vm358, %v352, %v204
  %v361 = vsel %vm358, %v353, %v205
  %v362 = vsel %vm358, %v354, %v206
  %v363 = vsel %vm358, %v355, %v207
  %v364 = vsel %vm358, %v356, %v208
  %v365 = vsel %vm358, %v357, %v209
  %vm366 = vcmask 1041408
  %v367 = vsel %vm366, %v203, %v242
  %v368 = vsel %vm366, %v204, %v243
  %v369 = vsel %vm366, %v205, %v244
  %v370 = vsel %vm366, %v206, %v245
  %v371 = vsel %vm366, %v207, %v246
  %v372 = vsel %vm366, %v208, %v247
  %v373 = vsel %vm366, %v209, %v248
  %vm374 = vcmask 1044480
  %v375 = vsel %vm374, %v367, %v281
  %v376 = vsel %vm374, %v368, %v282
  %v377 = vsel %vm374, %v369, %v283
  %v378 = vsel %vm374, %v370, %v284
  %v379 = vsel %vm374, %v371, %v285
  %v380 = vsel %vm374, %v372, %v286
  %v381 = vsel %vm374, %v373, %v287
  %v382 = vsel %vm326, %v312, 1.0
  %v383 = vsel %vm326, %v313, 1.0
  %v384 = vsel %vm326, %v314, 1.0
  %v385 = vsel %vm326, %v315, 1.0
  %v386 = vsel %vm326, %v316, 1.0
  %v387 = vsel %vm326, %v317, 1.0
  %v388 = vsel %vm326, %v318, 1.0
  %v389 = vld [vmem:[%s0] sm:$0xff]
  %vm390 = vcmask 228352
  %v392 = vsel %vm390, %v389, 0
  %v395 = vsel %vm350, %v382, 0
  %v398 = vsel %vm350, %v383, 0
  %v401 = vsel %vm350, %v384, 0
  %v404 = vsel %vm350, %v385, 0
  %v407 = vsel %vm350, %v386, 0
  %v410 = vsel %vm350, %v387, 0
  %v413 = vsel %vm350, %v388, 0
  %415 = vmatprep.subr.mxu0 %v336
  %416 = vmatpush1.msra.mxu0 %v335
  %417 = vmatprep.subr.mxu0 %v360
  %418 = vmatpush1.msra.mxu0 %v359
  %419 = vmatprep.subr.mxu0 %v376
  %420 = vmatpush1.msra.mxu0 %v375
  %421 = vmatprep.subr.mxu0 %v398
  %422 = vmatpush1.msra.mxu0 %v395
  %423 = vmatprep.subr.mxu0 0.0
  %424 = vmatpush1.msra.mxu0 0.0
  %425 = vmatprep.subr.mxu0 0.0
  %426 = vmatpush1.msra.mxu0 0.0
  %427 = vmatprep.subr.mxu0 0.0
  %428 = vmatpush1.msra.mxu0 0.0
  %429 = vmatprep.subr.mxu0 0.0
  %430 = vmatpush1.msra.mxu0 0.0
  %431 = vmatprep.subr.mxu0 0.0
  %432 = vmatpush1.msra.mxu0 0.0
  %433 = vmatprep.subr.mxu0 0.0
  %434 = vmatpush1.msra.mxu0 0.0
  %435 = vmatprep.subr.mxu0 0.0
  %436 = vmatpush1.msra.mxu0 0.0
  %437 = vmatprep.subr.mxu0 0.0
  %438 = vmatpush1.msra.mxu0 0.0
  %439 = vmatprep.subr.mxu0 0.0
  %440 = vmatpush1.msra.mxu0 0.0
  %441 = vmatprep.subr.mxu0 0.0
  %442 = vmatpush1.msra.mxu0 0.0
  %443 = vmatprep.subr.mxu0 0.0
  %444 = vmatpush1.msra.mxu0 0.0
  %445 = vmatprep.subr.mxu0 0.0
  %446 = vmatpush1.msra.mxu0 0.0
  %447 = vmatprep.subr.mxu0 0.0
  %448 = vmatpush1.msra.mxu0 0.0
  %449 = vmatprep.subr.mxu0 0.0
  %450 = vmatpush1.msra.mxu0 0.0
  %451 = vmatprep.subr.mxu0 0.0
  %452 = vmatpush1.msra.mxu0 0.0
  %453 = vmatprep.subr.mxu0 0.0
  %454 = vmatpush1.msra.mxu0 0.0
  %455 = vmatprep.subr.mxu0 0.0
  %456 = vmatpush1.msra.mxu0 0.0
  %457 = vmatprep.subr.mxu0 0.0
  %458 = vmatpush1.msra.mxu0 0.0
  %459 = vmatprep.subr.mxu0 0.0
  %460 = vmatpush1.msra.mxu0 0.0
  %461 = vmatprep.subr.mxu0 0.0
  %462 = vmatpush1.msra.mxu0 0.0
  %463 = vmatprep.subr.mxu0 0.0
  %464 = vmatpush1.msra.mxu0 0.0
  %465 = vmatprep.subr.mxu0 0.0
  %466 = vmatpush1.msra.mxu0 0.0
  %467 = vmatprep.subr.mxu0 0.0
  %468 = vmatpush1.msra.mxu0 0.0
  %469 = vmatprep.subr.mxu0 0.0
  %470 = vmatpush1.msra.mxu0 0.0
  %471 = vmatprep.subr.mxu0 0.0
  %472 = vmatpush1.msra.mxu0 0.0
  %473 = vmatprep.subr.mxu0 0.0
  %474 = vmatpush1.msra.mxu0 0.0
  %475 = vmatprep.subr.mxu0 0.0
  %476 = vmatpush1.msra.mxu0 0.0
  %477 = vmatprep.subr.mxu0 0.0
  %478 = vmatpush1.msra.mxu0 0.0
  %479 = vmatprep.mubr.f32.mxu0 0.0
  %480 = vmatmul.mubr.f32.gmra.mrb[0].mxu0 %v392
  %v481 = vpop.f32.mrb[0].mxu0
  %v482 = vadd.f32 0.0, %v481
  %v483 = vpop.f32.mrb[0].mxu0
  %v484 = vadd.f32 0.0, %v483
  %485 = vdwg.mxu0
  %486 = vmatprep.subr.mxu0 %v338
  %487 = vmatpush1.msra.mxu0 %v337
  %488 = vmatprep.subr.mxu0 %v362
  %489 = vmatpush1.msra.mxu0 %v361
  %490 = vmatprep.subr.mxu0 %v378
  %491 = vmatpush1.msra.mxu0 %v377
  %492 = vmatprep.subr.mxu0 %v404
  %493 = vmatpush1.msra.mxu0 %v401
  %494 = vmatprep.subr.mxu0 0.0
  %495 = vmatpush1.msra.mxu0 0.0
  %496 = vmatprep.subr.mxu0 0.0
  %497 = vmatpush1.msra.mxu0 0.0
  %498 = vmatprep.subr.mxu0 0.0
  %499 = vmatpush1.msra.mxu0 0.0
  %500 = vmatprep.subr.mxu0 0.0
  %501 = vmatpush1.msra.mxu0 0.0
  %502 = vmatprep.subr.mxu0 0.0
  %503 = vmatpush1.msra.mxu0 0.0
  %504 = vmatprep.subr.mxu0 0.0
  %505 = vmatpush1.msra.mxu0 0.0
  %506 = vmatprep.subr.mxu0 0.0
  %507 = vmatpush1.msra.mxu0 0.0
  %508 = vmatprep.subr.mxu0 0.0
  %509 = vmatpush1.msra.mxu0 0.0
  %510 = vmatprep.subr.mxu0 0.0
  %511 = vmatpush1.msra.mxu0 0.0
  %512 = vmatprep.subr.mxu0 0.0
  %513 = vmatpush1.msra.mxu0 0.0
  %514 = vmatprep.subr.mxu0 0.0
  %515 = vmatpush1.msra.mxu0 0.0
  %516 = vmatprep.subr.mxu0 0.0
  %517 = vmatpush1.msra.mxu0 0.0
  %518 = vmatprep.subr.mxu0 0.0
  %519 = vmatpush1.msra.mxu0 0.0
  %520 = vmatprep.subr.mxu0 0.0
  %521 = vmatpush1.msra.mxu0 0.0
  %522 = vmatprep.subr.mxu0 0.0
  %523 = vmatpush1.msra.mxu0 0.0
  %524 = vmatprep.subr.mxu0 0.0
  %525 = vmatpush1.msra.mxu0 0.0
  %526 = vmatprep.subr.mxu0 0.0
  %527 = vmatpush1.msra.mxu0 0.0
  %528 = vmatprep.subr.mxu0 0.0
  %529 = vmatpush1.msra.mxu0 0.0
  %530 = vmatprep.subr.mxu0 0.0
  %531 = vmatpush1.msra.mxu0 0.0
  %532 = vmatprep.subr.mxu0 0.0
  %533 = vmatpush1.msra.mxu0 0.0
  %534 = vmatprep.subr.mxu0 0.0
  %535 = vmatpush1.msra.mxu0 0.0
  %536 = vmatprep.subr.mxu0 0.0
  %537 = vmatpush1.msra.mxu0 0.0
  %538 = vmatprep.subr.mxu0 0.0
  %539 = vmatpush1.msra.mxu0 0.0
  %540 = vmatprep.subr.mxu0 0.0
  %541 = vmatpush1.msra.mxu0 0.0
  %542 = vmatprep.subr.mxu0 0.0
  %543 = vmatpush1.msra.mxu0 0.0
  %544 = vmatprep.subr.mxu0 0.0
  %545 = vmatpush1.msra.mxu0 0.0
  %546 = vmatprep.subr.mxu0 0.0
  %547 = vmatpush1.msra.mxu0 0.0
  %548 = vmatprep.subr.mxu0 0.0
  %549 = vmatpush1.msra.mxu0 0.0
  %550 = vmatprep.mubr.f32.mxu0 0.0
  %551 = vmatmul.mubr.f32.gmra.mrb[0].mxu0 %v392
  %v552 = vpop.f32.mrb[0].mxu0
  %v553 = vadd.f32 0.0, %v552
  %v554 = vpop.f32.mrb[0].mxu0
  %v555 = vadd.f32 0.0, %v554
  %556 = vdwg.mxu0
  %557 = vmatprep.subr.mxu0 %v340
  %558 = vmatpush1.msra.mxu0 %v339
  %559 = vmatprep.subr.mxu0 %v364
  %560 = vmatpush1.msra.mxu0 %v363
  %561 = vmatprep.subr.mxu0 %v380
  %562 = vmatpush1.msra.mxu0 %v379
  %563 = vmatprep.subr.mxu0 %v410
  %564 = vmatpush1.msra.mxu0 %v407
  %565 = vmatprep.subr.mxu0 0.0
  %566 = vmatpush1.msra.mxu0 0.0
  %567 = vmatprep.subr.mxu0 0.0
  %568 = vmatpush1.msra.mxu0 0.0
  %569 = vmatprep.subr.mxu0 0.0
  %570 = vmatpush1.msra.mxu0 0.0
  %571 = vmatprep.subr.mxu0 0.0
  %572 = vmatpush1.msra.mxu0 0.0
  %573 = vmatprep.subr.mxu0 0.0
  %574 = vmatpush1.msra.mxu0 0.0
  %575 = vmatprep.subr.mxu0 0.0
  %576 = vmatpush1.msra.mxu0 0.0
  %577 = vmatprep.subr.mxu0 0.0
  %578 = vmatpush1.msra.mxu0 0.0
  %579 = vmatprep.subr.mxu0 0.0
  %580 = vmatpush1.msra.mxu0 0.0
  %581 = vmatprep.subr.mxu0 0.0
  %582 = vmatpush1.msra.mxu0 0.0
  %583 = vmatprep.subr.mxu0 0.0
  %584 = vmatpush1.msra.mxu0 0.0
  %585 = vmatprep.subr.mxu0 0.0
  %586 = vmatpush1.msra.mxu0 0.0
  %587 = vmatprep.subr.mxu0 0.0
  %588 = vmatpush1.msra.mxu0 0.0
  %589 = vmatprep.subr.mxu0 0.0
  %590 = vmatpush1.msra.mxu0 0.0
  %591 = vmatprep.subr.mxu0 0.0
  %592 = vmatpush1.msra.mxu0 0.0
  %593 = vmatprep.subr.mxu0 0.0
  %594 = vmatpush1.msra.mxu0 0.0
  %595 = vmatprep.subr.mxu0 0.0
  %596 = vmatpush1.msra.mxu0 0.0
  %597 = vmatprep.subr.mxu0 0.0
  %598 = vmatpush1.msra.mxu0 0.0
  %599 = vmatprep.subr.mxu0 0.0
  %600 = vmatpush1.msra.mxu0 0.0
  %601 = vmatprep.subr.mxu0 0.0
  %602 = vmatpush1.msra.mxu0 0.0
  %603 = vmatprep.subr.mxu0 0.0
  %604 = vmatpush1.msra.mxu0 0.0
  %605 = vmatprep.subr.mxu0 0.0
  %606 = vmatpush1.msra.mxu0 0.0
  %607 = vmatprep.subr.mxu0 0.0
  %608 = vmatpush1.msra.mxu0 0.0
  %609 = vmatprep.subr.mxu0 0.0
  %610 = vmatpush1.msra.mxu0 0.0
  %611 = vmatprep.subr.mxu0 0.0
  %612 = vmatpush1.msra.mxu0 0.0
  %613 = vmatprep.subr.mxu0 0.0
  %614 = vmatpush1.msra.mxu0 0.0
  %615 = vmatprep.subr.mxu0 0.0
  %616 = vmatpush1.msra.mxu0 0.0
  %617 = vmatprep.subr.mxu0 0.0
  %618 = vmatpush1.msra.mxu0 0.0
  %619 = vmatprep.subr.mxu0 0.0
  %620 = vmatpush1.msra.mxu0 0.0
  %621 = vmatprep.mubr.f32.mxu0 0.0
  %622 = vmatmul.mubr.f32.gmra.mrb[0].mxu0 %v392
  %v623 = vpop.f32.mrb[0].mxu0
  %v624 = vadd.f32 0.0, %v623
  %v625 = vpop.f32.mrb[0].mxu0
  %v626 = vadd.f32 0.0, %v625
  %627 = vdwg.mxu0
  %628 = vmatprep.subr.mxu0 0.0
  %629 = vmatpush1.msra.mxu0 %v341
  %630 = vmatprep.subr.mxu0 0.0
  %631 = vmatpush1.msra.mxu0 %v365
  %632 = vmatprep.subr.mxu0 0.0
  %633 = vmatpush1.msra.mxu0 %v381
  %634 = vmatprep.subr.mxu0 0.0
  %635 = vmatpush1.msra.mxu0 %v413
  %636 = vmatprep.subr.mxu0 0.0
  %637 = vmatpush1.msra.mxu0 0.0
  %638 = vmatprep.subr.mxu0 0.0
  %639 = vmatpush1.msra.mxu0 0.0
  %640 = vmatprep.subr.mxu0 0.0
  %641 = vmatpush1.msra.mxu0 0.0
  %642 = vmatprep.subr.mxu0 0.0
  %643 = vmatpush1.msra.mxu0 0.0
  %644 = vmatprep.subr.mxu0 0.0
  %645 = vmatpush1.msra.mxu0 0.0
  %646 = vmatprep.subr.mxu0 0.0
  %647 = vmatpush1.msra.mxu0 0.0
  %648 = vmatprep.subr.mxu0 0.0
  %649 = vmatpush1.msra.mxu0 0.0
  %650 = vmatprep.subr.mxu0 0.0
  %651 = vmatpush1.msra.mxu0 0.0
  %652 = vmatprep.subr.mxu0 0.0
  %653 = vmatpush1.msra.mxu0 0.0
  %654 = vmatprep.subr.mxu0 0.0
  %655 = vmatpush1.msra.mxu0 0.0
  %656 = vmatprep.subr.mxu0 0.0
  %657 = vmatpush1.msra.mxu0 0.0
  %658 = vmatprep.subr.mxu0 0.0
  %659 = vmatpush1.msra.mxu0 0.0
  %660 = vmatprep.subr.mxu0 0.0
  %661 = vmatpush1.msra.mxu0 0.0
  %662 = vmatprep.subr.mxu0 0.0
  %663 = vmatpush1.msra.mxu0 0.0
  %664 = vmatprep.subr.mxu0 0.0
  %665 = vmatpush1.msra.mxu0 0.0
  %666 = vmatprep.subr.mxu0 0.0
  %667 = vmatpush1.msra.mxu0 0.0
  %668 = vmatprep.subr.mxu0 0.0
  %669 = vmatpush1.msra.mxu0 0.0
  %670 = vmatprep.subr.mxu0 0.0
  %671 = vmatpush1.msra.mxu0 0.0
  %672 = vmatprep.subr.mxu0 0.0
  %673 = vmatpush1.msra.mxu0 0.0
  %674 = vmatprep.subr.mxu0 0.0
  %675 = vmatpush1.msra.mxu0 0.0
  %676 = vmatprep.subr.mxu0 0.0
  %677 = vmatpush1.msra.mxu0 0.0
  %678 = vmatprep.subr.mxu0 0.0
  %679 = vmatpush1.msra.mxu0 0.0
  %680 = vmatprep.subr.mxu0 0.0
  %681 = vmatpush1.msra.mxu0 0.0
  %682 = vmatprep.subr.mxu0 0.0
  %683 = vmatpush1.msra.mxu0 0.0
  %684 = vmatprep.subr.mxu0 0.0
  %685 = vmatpush1.msra.mxu0 0.0
  %686 = vmatprep.subr.mxu0 0.0
  %687 = vmatpush1.msra.mxu0 0.0
  %688 = vmatprep.subr.mxu0 0.0
  %689 = vmatpush1.msra.mxu0 0.0
  %690 = vmatprep.subr.mxu0 0.0
  %691 = vmatpush1.msra.mxu0 0.0
  %692 = vmatprep.mubr.f32.mxu0 0.0
  %693 = vmatmul.mubr.f32.gmra.mrb[0].mxu0 %v392
  %v694 = vpop.f32.mrb[0].mxu0
  %v695 = vadd.f32 0.0, %v694
  %v696 = vpop.f32.mrb[0].mxu0
  %697 = vdwg.mxu0
  %698 = vst [vmem:[%s2] sm:$0xff] %v482
  %699 = vst [vmem:[%s2 + $0x8] sm:$0xff] %v484
  %700 = vst [vmem:[%s2 + $0x10] sm:$0xff] %v553
  %701 = vst [vmem:[%s2 + $0x18] sm:$0xff] %v555
  %702 = vst [vmem:[%s2 + $0x20] sm:$0xff] %v624
  %703 = vst [vmem:[%s2 + $0x28] sm:$0xff] %v626
  %704 = vst [vmem:[%s2 + $0x30] sm:$0xff] %v695
  // Predicated region
  $region10: #{conv2d_pallas.1} parent=0 // pred_check
    _
  $region11: #{conv2d_pallas.1} parent=0 // pred_check_branch
    %706 = sbr.rel (0) target = $region13
  $region12: #{conv2d_pallas.1} parent=0 // pred_region
    _
  $region13: #{conv2d_pallas.1} parent=0 // pred_fallthru
    _
  // Predicated region
  $region14: #{conv2d_pallas.1} parent=0 // pred_check
    _
  $region15: #{conv2d_pallas.1} parent=0 // pred_check_branch
    %708 = sbr.rel (0) target = $region17
  $region16: #{conv2d_pallas.1} parent=0 // pred_region
    _
  $region17: #{conv2d_pallas.1} parent=0 // pred_fallthru
    _

</llo_original>
